<compile_context>
chip_gen: v5e
topology: v5e:2x2
jax: 0.10.0
libtpu: 0.0.40
codegen_flags: <defaults>
</compile_context>

<pallas_src>
import jax
import jax.numpy as jnp
from jax.experimental import pallas as pl
from jax.experimental.pallas import tpu as pltpu


def _time_decay_kernel_flat(neg_a2_ref, lag_ref, out_ref):
    # neg_a2_ref: VMEM (H, 1)  f32, precomputed -(alphas**2)
    # lag_ref:    VMEM (BB, 1, TT)   flattened lag rows for BB batches
    # out_ref:    VMEM (BB, H, TT)   all heads for those batches
    lag = lag_ref[...].astype(jnp.float32)            # (BB, 1, TT)
    neg = neg_a2_ref[...]                             # (H, 1)
    # (1, H, 1) * (BB, 1, TT) -> (BB, H, TT): one VPU mul, one EUP exp,
    # one cast, one dense store (H packs the sublane axis, TT the lanes).
    out = jnp.exp(neg[None, :, :] * lag)
    out_ref[...] = out.astype(out_ref.dtype)


def _time_decay_kernel_rows(neg_a2_ref, lag_ref, out_ref):
    # neg_a2_ref: VMEM (H, 1, 1) f32
    # lag_ref:    VMEM (1, TR, T)    one batch's row tile (native layout)
    # out_ref:    VMEM (1, H, TR, T) all heads for that row tile
    lag = lag_ref[...].astype(jnp.float32)             # (1, TR, T)
    neg = neg_a2_ref[...]                              # (H, 1, 1)
    out = jnp.exp(neg[None] * lag[:, None])            # (1, H, TR, T)
    out_ref[...] = out.astype(out_ref.dtype)


def time_decayer(lag_matrix: jax.Array, alphas: jax.Array, out_dtype=None) -> jax.Array:
    """exp(-alphas^2[None,:,None,None] * lag_matrix[:,None,:,:])."""
    B, T, T2 = lag_matrix.shape
    assert T == T2, "lag_matrix must be (B, T, T)"
    H = alphas.shape[0]

    # Output follows the lag dtype by default (bf16 in -> bf16 out halves the
    # dominant HBM write stream); compute is always f32.
    if out_dtype is None:
        out_dtype = lag_matrix.dtype
    out_isz = jnp.dtype(out_dtype).itemsize
    in_isz = jnp.dtype(lag_matrix.dtype).itemsize

    # Tiny (H,) precompute, done once outside the grid.
    neg_a2 = -(alphas.astype(jnp.float32) ** 2)

    # Device-derived VMEM budget (keeps v7x's 64 MiB safe; generous on v5e/v6e),
    # with headroom left for Mosaic internal scratch.
    try:
        vmem_cap = pltpu.get_tpu_info().vmem_capacity_bytes
    except Exception:
        vmem_cap = 64 << 20  # conservative fallback: v7x per-TensorCore VMEM
    vmem_budget = max(16 << 20, vmem_cap - (16 << 20))

    total = B * H * T * T
    cost = pl.CostEstimate(
        flops=total,
        transcendentals=total,
        bytes_accessed=B * T * T * in_isz + total * out_isz + H * 4,
    )

    target_out_block = 2 << 20  # ~2 MiB of output per grid step

    if T < 128:
        # ---- Small-T path: lane-dense flattened tiles + batch folding ----
        TT = T * T
        per_batch_out = H * TT * out_isz
        BB = max(1, min(B, target_out_block // max(1, per_batch_out)))
        while BB > 1 and 2 * BB * (TT * in_isz + H * TT * out_isz) > vmem_budget // 2:
            BB //= 2

        # Metadata-scale reshape; tensor is small here so any relayout is cheap.
        lag_flat = lag_matrix.reshape(B, 1, TT)
        neg_col = neg_a2.reshape(H, 1)

        footprint = 2 * BB * (TT * in_isz + H * TT * out_isz) + H * 4
        vmem_limit = int(min(max(footprint + (4 << 20), 16 << 20), vmem_budget))

        out_flat = pl.pallas_call(
            _time_decay_kernel_flat,
            out_shape=jax.ShapeDtypeStruct((B, H, TT), out_dtype),
            grid=(pl.cdiv(B, BB),),
            in_specs=[
                pl.BlockSpec((H, 1), lambda b: (0, 0)),          # tiny, re-used every step
                pl.BlockSpec((BB, 1, TT), lambda b: (b, 0, 0)),  # BB batches of lag rows
            ],
            out_specs=pl.BlockSpec((BB, H, TT), lambda b: (b, 0, 0)),
            compiler_params=pltpu.CompilerParams(
                dimension_semantics=("parallel",),
                vmem_limit_bytes=vmem_limit,
            ),
            cost_estimate=cost,
        )(neg_col, lag_flat)
        return out_flat.reshape(B, H, T, T)

    # ---- Large-T path: native 4-D layout, row-tiled second grid axis ----
    # (No wrapper reshape of the dominant tensor -> no relayout-copy risk.)
    row_bytes = H * T * out_isz
    TR = target_out_block // max(1, row_bytes)
    if TR >= T:
        TR = T
    else:
        TR = max(8, (TR // 8) * 8)  # second-minor block dim must be 8-aligned
    while TR > 8 and 2 * (TR * T * in_isz + H * TR * T * out_isz) > vmem_budget // 2:
        TR = max(8, ((TR // 2) // 8) * 8)

    neg_col = neg_a2.reshape(H, 1, 1)
    footprint = 2 * (TR * T * in_isz + H * TR * T * out_isz) + H * 4
    vmem_limit = int(min(max(footprint + (4 << 20), 16 << 20), vmem_budget))

    return pl.pallas_call(
        _time_decay_kernel_rows,
        out_shape=jax.ShapeDtypeStruct((B, H, T, T), out_dtype),
        grid=(B, pl.cdiv(T, TR)),
        in_specs=[
            pl.BlockSpec((H, 1, 1), lambda b, r: (0, 0, 0)),
            pl.BlockSpec((1, TR, T), lambda b, r: (b, r, 0)),
        ],
        out_specs=pl.BlockSpec((1, H, TR, T), lambda b, r: (b, 0, r, 0)),
        compiler_params=pltpu.CompilerParams(
            dimension_semantics=("parallel", "parallel"),
            vmem_limit_bytes=vmem_limit,
        ),
        cost_estimate=cost,
    )(neg_col, lag_matrix)


if __name__ == "__main__":
    key = jax.random.PRNGKey(0)
    k_alpha, k_lag = jax.random.split(key)

    heads = 4
    B, T = 2, 16

    # Deterministic "parameter" init (mirrors torch.randn((heads,))).
    alphas = jax.random.normal(k_alpha, (heads,), dtype=jnp.float32)
    # A generic non-negative lag matrix (e.g. |i - j|-style lags).
    lag_matrix = jnp.abs(jax.random.normal(k_lag, (B, T, T), dtype=jnp.float32)) * 3.0

    out = time_decayer(lag_matrix, alphas)
    out = jax.block_until_ready(out)

    # Pure-JAX reference check.
    ref = jnp.exp(-(alphas[None, :, None, None] ** 2) * lag_matrix[:, None, :, :])
    assert out.shape == (B, heads, T, T)
    assert jnp.allclose(out, ref, rtol=1e-6, atol=1e-6), "mismatch vs reference"

    print("KERNEL_OK")
</pallas_src>

<mosaic_0001>
module attributes {stable_mosaic.version = 11 : i64} {
  func.func @_time_decay_kernel_flat(%arg0: i32, %arg1: memref<4x1xf32, #tpu.memory_space<vmem>>, %arg2: memref<2x1x256xf32, #tpu.memory_space<vmem>>, %arg3: memref<2x4x256xf32, #tpu.memory_space<vmem>>) attributes {dimension_semantics = [#tpu.dimension_semantics<parallel>], iteration_bounds = array<i64: 1>, scalar_prefetch = 0 : i64, scratch_operands = 0 : i64, tpu.core_type = #tpu.core_type<tc>, window_params = [{pipeline_mode = #tpu.pipeline_mode<synchronous>, transform_indices = @transform_0, window_bounds = array<i64: 4, 1>}, {transform_indices = @transform_1, window_bounds = array<i64: 2, 1, 256>}, {transform_indices = @transform_2, window_bounds = array<i64: 2, 4, 256>}]} {
    %c0 = arith.constant 0 : index
    %c0_0 = arith.constant 0 : index
    %c0_1 = arith.constant 0 : index
    %0 = vector.load %arg2[%c0, %c0_0, %c0_1] : memref<2x1x256xf32, #tpu.memory_space<vmem>>, vector<2x1x256xf32>
    %c0_2 = arith.constant 0 : index
    %c0_3 = arith.constant 0 : index
    %1 = vector.load %arg1[%c0_2, %c0_3] : memref<4x1xf32, #tpu.memory_space<vmem>>, vector<4x1xf32>
    %2 = vector.shape_cast %1 : vector<4x1xf32> to vector<1x4x1xf32>
    %3 = vector.broadcast %2 : vector<1x4x1xf32> to vector<2x4x256xf32>
    %4 = vector.broadcast %0 : vector<2x1x256xf32> to vector<2x4x256xf32>
    %5 = arith.mulf %3, %4 : vector<2x4x256xf32>
    %6 = math.exp %5 : vector<2x4x256xf32>
    %c0_4 = arith.constant 0 : index
    %c0_5 = arith.constant 0 : index
    %c0_6 = arith.constant 0 : index
    %7 = vector.load %arg3[%c0_4, %c0_5, %c0_6] : memref<2x4x256xf32, #tpu.memory_space<vmem>>, vector<2x4x256xf32>
    tpu.vector_store %arg3[%c0_4, %c0_5, %c0_6], %6 {strides = array<i32>} : memref<2x4x256xf32, #tpu.memory_space<vmem>>, vector<2x4x256xf32>,
    return
  }
  func.func @transform_0(%arg0: i32) -> (i32, i32) {
    %c0_i32 = arith.constant 0 : i32
    %c0_i32_0 = arith.constant 0 : i32
    %c0_i32_1 = arith.constant 0 : i32
    return %c0_i32, %c0_i32_0 : i32, i32
  }
  func.func @transform_1(%arg0: i32) -> (i32, i32, i32) {
    %c0_i32 = arith.constant 0 : i32
    %c0_i32_0 = arith.constant 0 : i32
    %c0_i32_1 = arith.constant 0 : i32
    return %arg0, %c0_i32, %c0_i32_0 : i32, i32, i32
  }
  func.func @transform_2(%arg0: i32) -> (i32, i32, i32) {
    %c0_i32 = arith.constant 0 : i32
    %c0_i32_0 = arith.constant 0 : i32
    %c0_i32_1 = arith.constant 0 : i32
    return %arg0, %c0_i32, %c0_i32_0 : i32, i32, i32
  }
}

</mosaic_0001>

<llo_original>
// kernel: tpu_custom_call.1
$region0: #{tpu_custom_call.1}
  #allocation0 [shape = 'u32[]', space=smem, size = 0x4, offset = 0x4, fixed_abs, tag = 'smem constant byte address 0x4 - core index']
  #allocation1 [shape = 'u32[72,128]{1,0:T(1,128)}', space=vmem, size = 0x9000, scoped, tag = 'internal scratch']
  %s0 = inlined_call_operand.vmem [shape: f32[4,1], index: 0, kind: input, shape index: {}]
  %s1 = inlined_call_operand.vmem [shape: f32[2,1,256], index: 1, kind: input, shape index: {}]
  %s2 = inlined_call_operand.hbm [shape: f32[2,4,256], index: 2, kind: output, shape index: {}]
  %s3 = sld [smem:[#allocation0]]
  $region18: #{tpu_custom_call.1} parent=0
    _
  %s5 = ssub.s32 1, %s3
  %s6 = scalar_select 0, %s5, %s3
  $region1: #{tpu_custom_call.1} parent=0
    #allocation2 [shape = 'u8[8192]{0}', space=vmem, size = 0x2000, scoped, tag = 'output window, operand 0, single buffered']
    #allocation3 [shape = 's32[1]{0}', space=sflag, size = 0x4, scoped, tag = 'scoped memory for tpu_custom_call.1']
    %7 = vsyncpa [#allocation3], 0
    // Predicated region
    $region2: #{tpu_custom_call.1} parent=1 // pred_check
      _
    $region3: #{tpu_custom_call.1} parent=1 // pred_check_branch
      %9 = sbr.rel (0) target = $region5
    $region4: #{tpu_custom_call.1} parent=1 // pred_region
      _
    $region5: #{tpu_custom_call.1} parent=1 // pred_fallthru
      _
    // Predicated region
    $region6: #{tpu_custom_call.1} parent=1 // pred_check
      _
    $region7: #{tpu_custom_call.1} parent=1 // pred_check_branch
      %11 = sbr.rel (0) target = $region9
    $region8: #{tpu_custom_call.1} parent=1 // pred_region
      _
    $region9: #{tpu_custom_call.1} parent=1 // pred_fallthru
      _
    %v12 = vld [vmem:[%s1] sm:$0x3]
    %v13 = vld [vmem:[%s1 + $0x2] sm:$0x3]
    %v14 = vld [vmem:[%s0] sm:$0xf]
    %16 = vset.pattern.permute.xlu0 0
    %17 = vperm.xlu0 %16, %v14
    %v18 = vpop.permute.xlu0 %17
    %v22 = vperm.slane %v12, 0
    %v23 = vperm.slane %v12, 1
    %v24 = vperm.slane %v13, 0
    %v25 = vperm.slane %v13, 1
    %v30 = vmul.f32 %v18, %v22
    %v31 = vmul.f32 %v18, %v23
    %v32 = vmul.f32 %v18, %v24
    %v33 = vmul.f32 %v18, %v25
    %v34 = vmul.f32 %v30, 1.442695
    %v35 = vpow.pop %v34
    %v36 = vmul.f32 %v31, 1.442695
    %v37 = vpow.pop %v36
    %v38 = vmul.f32 %v32, 1.442695
    %v39 = vpow.pop %v38
    %v40 = vmul.f32 %v33, 1.442695
    %v41 = vpow.pop %v40
    %v46 = vrot.slane %v37, 4
    %v47 = vrot.slane %v41, 4
    %vm48 = vcmask 1043456
    %v49 = vsel %vm48, %v35, %v46
    %v50 = vsel %vm48, %v39, %v47
    %53 = vst [vmem:[#allocation2] sm:$0xff] %v49
    %54 = vst [vmem:[#allocation2 + $0x8] sm:$0xff] %v50
    // Predicated region
    $region10: #{tpu_custom_call.1} parent=1 // pred_check
      _
    $region11: #{tpu_custom_call.1} parent=1 // pred_check_branch
      %56 = sbr.rel (0) target = $region13
    $region12: #{tpu_custom_call.1} parent=1 // pred_region
      %58 = vsyncadd [#allocation3], 0
      %s59 = sshll.u32 [#allocation2], 4
      %s60 = int_to_ptr.vmem [resolvable:$true] %s59
      %s61 = sshll.u32 %s2, 4
      %s62 = int_to_ptr.hbm [resolvable:$true] %s61
      %67 = dma.vmem_to_hbm [thread:$0]  %s60, 256, %s62, [#allocation3], 128, 128, 8
    $region13: #{tpu_custom_call.1} parent=1 // pred_fallthru
      _
    // Predicated region
    $region14: #{tpu_custom_call.1} parent=1 // pred_check
      _
    $region15: #{tpu_custom_call.1} parent=1 // pred_check_branch
      %69 = sbr.rel (0) target = $region17
    $region16: #{tpu_custom_call.1} parent=1 // pred_region
      %71 = dma.done [#allocation3], 256
    $region17: #{tpu_custom_call.1} parent=1 // pred_fallthru
      _
    %72 = vsyncpa [#allocation3], 1

</llo_original>
